<compile_context>
chip_gen: v7x
topology: tpu7x:2x2x1
jax: 0.10.0
libtpu: 0.0.40
codegen_flags: <defaults>
</compile_context>

<pallas_src>
import functools

import jax
import jax.numpy as jnp
from jax.experimental import pallas as pl
from jax.experimental.pallas import tpu as pltpu

_LANE = 128


def _round_up(x, m):
    return ((x + m - 1) // m) * m


def vc_encoder_kernel(self_ref, neigh_ref, w_cat_ref, b_ref, out_ref):
    """One row-tile of the VC_Encoder forward.

    self_ref  : [tn, Dp]      bf16
    neigh_ref : [tn, H, Dp]   bf16
    w_cat_ref : [2*Dp, Dp]    bf16   ([W_self ; W_neigh / H])
    b_ref     : [1, Dp]       f32
    out_ref   : [tn, Dp]      f32
    """
    # Neighbor aggregation: sum over the history axis (the 1/H of the mean is
    # folded into the neighbor half of w_cat host-side).  Sum in f32 on the
    # XLU/VPU, feed the MXU in bf16.
    neigh_sum = jnp.sum(neigh_ref[...].astype(jnp.float32), axis=1)

    # combined = cat([self, neigh]) along the lane axis -> single K = 2*Dp matmul.
    x_cat = jnp.concatenate(
        [self_ref[...], neigh_sum.astype(self_ref.dtype)], axis=-1)

    acc = jnp.dot(x_cat, w_cat_ref[...], preferred_element_type=jnp.float32)

    # bias + ReLU
    out_ref[...] = jnp.maximum(acc + b_ref[...], 0.0).astype(out_ref.dtype)


def _pick_tile_n(n, h, d_pad, feat_bytes, row_align, vmem_budget_bytes, tile_cap):
    """Largest row tile that fits the VMEM budget (double-buffered streams)."""
    # Per-row VMEM cost: neigh + self (bf16, double-buffered) + out (f32, double-buffered).
    per_row = 2 * (h * d_pad + d_pad) * feat_bytes + 2 * d_pad * 4
    # Resident weights + bias (count double-buffered as the worst case).
    fixed = 2 * (2 * d_pad) * d_pad * feat_bytes + 2 * d_pad * 4
    avail = max(vmem_budget_bytes - fixed, per_row * row_align)
    tile = int(avail // per_row)
    tile = max(row_align, (tile // row_align) * row_align)
    tile = min(tile, tile_cap, _round_up(n, row_align))
    # Prefer >= 2 grid steps when N allows, so both v7x TensorCores get work.
    if tile >= n and n > 2 * row_align:
        tile = _round_up(pl.cdiv(n, 2), row_align)
    return tile


def vc_encoder_forward(self_feats, neigh_embeds, w_full, bias, *,
                       tile_cap=1024,
                       vmem_budget_bytes=32 * 1024 * 1024,
                       vmem_limit_bytes=48 * 1024 * 1024):
    """relu(concat([self, mean(neigh, axis=1)], -1) @ w_full.T + bias)

    self_feats   : [N, D]    f32
    neigh_embeds : [N, H, D] f32
    w_full       : [D, 2D]   f32  (PyTorch nn.Linear(2D, D).weight layout)
    bias         : [D]       f32
    """
    n, d = self_feats.shape
    h = neigh_embeds.shape[1]
    d_pad = _round_up(d, _LANE)                 # lane-dense feature dim
    feat_dtype = jnp.bfloat16
    feat_bytes = jnp.dtype(feat_dtype).itemsize
    row_align = 16                              # bf16 sublane packing

    tile_n = _pick_tile_n(n, h, d_pad, feat_bytes, row_align,
                          vmem_budget_bytes, tile_cap)
    n_pad = _round_up(n, tile_n)

    # --- parameter prep (once per call; negligible vs. the HBM stream) ---
    w_self = jnp.transpose(w_full[:, :d])           # [D, D]
    w_nb = jnp.transpose(w_full[:, d:]) / h         # fold 1/H of the mean into W
    w_cat = jnp.zeros((2 * d_pad, d_pad), jnp.float32)
    w_cat = w_cat.at[:d, :d].set(w_self)
    w_cat = w_cat.at[d_pad:d_pad + d, :d].set(w_nb)
    w_cat = w_cat.astype(feat_dtype)
    bias_pad = jnp.zeros((1, d_pad), jnp.float32).at[0, :d].set(bias)

    # --- activation prep: pad to lane/tile boundaries, cast to bf16 for DMA/MXU ---
    self_p = jnp.zeros((n_pad, d_pad), feat_dtype).at[:n, :d].set(
        self_feats.astype(feat_dtype))
    neigh_p = jnp.zeros((n_pad, h, d_pad), feat_dtype).at[:n, :, :d].set(
        neigh_embeds.astype(feat_dtype))

    grid = (n_pad // tile_n,)
    out = pl.pallas_call(
        vc_encoder_kernel,
        out_shape=jax.ShapeDtypeStruct((n_pad, d_pad), jnp.float32),
        grid_spec=pltpu.PrefetchScalarGridSpec(
            num_scalar_prefetch=0,
            grid=grid,
            in_specs=[
                pl.BlockSpec((tile_n, d_pad), lambda i: (i, 0)),        # self
                pl.BlockSpec((tile_n, h, d_pad), lambda i: (i, 0, 0)),  # neighbors
                pl.BlockSpec((2 * d_pad, d_pad), lambda i: (0, 0)),     # W_cat (resident)
                pl.BlockSpec((1, d_pad), lambda i: (0, 0)),             # bias  (resident)
            ],
            out_specs=pl.BlockSpec((tile_n, d_pad), lambda i: (i, 0)),
        ),
        compiler_params=pltpu.CompilerParams(
            dimension_semantics=("parallel",),
            vmem_limit_bytes=vmem_limit_bytes),
    )(self_p, neigh_p, w_cat, bias_pad)

    return out[:n, :d]


@functools.partial(jax.jit, static_argnames=("tile_cap",))
def vc_encoder_apply(features_weight, vc_features, history_vc,
                     w_full, bias, nodes, *, tile_cap=1024):
    # Gathers (features.weight[nodes] and the history-list lookups) kept inside
    # the same jit so XLA streams them into the kernel's input pipeline instead
    # of a separate materialize/read-back round trip of the [N,H,D] tensor.
    # TODO(synk): gather history rows fully in-kernel (scalar-prefetched indices
    # + manual DMA from vc_features kept in HBM) to drop the [N,H,D] HBM
    # intermediate entirely.
    self_feats = features_weight[nodes]                  # [N, D]
    neigh_embeds = vc_features[history_vc[nodes]]        # [N, H, D]
    return vc_encoder_forward(self_feats, neigh_embeds, w_full, bias,
                              tile_cap=tile_cap)


if __name__ == "__main__":
    key = jax.random.PRNGKey(0)
    k_feat, k_vc, k_w, k_b, k_hvc, k_hr = jax.random.split(key, 6)

    # small, deterministic synthetic setup
    num_nodes = 16     # size of `features` embedding table
    num_items = 12     # size of the item (vc) embedding table used by aggregator
    embed_dim = 32     # D
    hist_len = 8       # fixed history length H (padded lists)
    n_query = 8        # number of nodes in the forward batch

    # parameter tables (stand-ins for nn.Embedding weights)
    features_weight = jax.random.normal(k_feat, (num_nodes, embed_dim), jnp.float32)
    vc_features = jax.random.normal(k_vc, (num_items, embed_dim), jnp.float32)

    # linear1: PyTorch nn.Linear(2*D, D): weight [D, 2D], y = x @ W.T + b
    w_full = (jax.random.normal(k_w, (embed_dim, 2 * embed_dim), jnp.float32)
              * (1.0 / jnp.sqrt(2.0 * embed_dim)))
    bias = jax.random.normal(k_b, (embed_dim,), jnp.float32) * 0.01

    # history_vc_lists / history_r_lists as dense padded arrays
    history_vc = jax.random.randint(k_hvc, (num_nodes, hist_len), 0, num_items)
    history_r = jax.random.randint(k_hr, (num_nodes, hist_len), 0, 5)  # unused by mean aggregator

    # the batch of nodes to encode
    nodes = jnp.arange(n_query, dtype=jnp.int32)

    out = vc_encoder_apply(features_weight, vc_features, history_vc,
                           w_full, bias, nodes)
    out = jax.block_until_ready(out)

    # reference check in plain f32 JAX (kernel runs bf16 inputs / f32 accumulate)
    self_feats = features_weight[nodes]
    neigh_embeds = vc_features[history_vc[nodes]]
    neigh_mean_ref = jnp.mean(neigh_embeds, axis=1)
    combined_ref = jnp.concatenate([self_feats, neigh_mean_ref], axis=1)
    ref = jnp.maximum(combined_ref @ w_full.T + bias, 0.0)

    assert out.shape == (n_query, embed_dim)
    max_err = float(jnp.max(jnp.abs(out - ref)))
    assert jnp.allclose(out, ref, atol=5e-2, rtol=5e-2), f"max abs err {max_err}"

    print("KERNEL_OK")
</pallas_src>

<mosaic_0001>
module attributes {stable_mosaic.version = 11 : i64} {
  func.func @vc_encoder_kernel(%arg0: i32, %arg1: memref<16x128xbf16, #tpu.memory_space<vmem>>, %arg2: memref<16x8x128xbf16, #tpu.memory_space<vmem>>, %arg3: memref<256x128xbf16, #tpu.memory_space<vmem>>, %arg4: memref<1x128xf32, #tpu.memory_space<vmem>>, %arg5: memref<16x128xf32, #tpu.memory_space<vmem>>) attributes {dimension_semantics = [#tpu.dimension_semantics<parallel>], iteration_bounds = array<i64: 1>, scalar_prefetch = 0 : i64, scratch_operands = 0 : i64, tpu.core_type = #tpu.core_type<tc>, window_params = [{transform_indices = @transform_0, window_bounds = array<i64: 16, 128>}, {transform_indices = @transform_1, window_bounds = array<i64: 16, 8, 128>}, {pipeline_mode = #tpu.pipeline_mode<synchronous>, transform_indices = @transform_2, window_bounds = array<i64: 256, 128>}, {pipeline_mode = #tpu.pipeline_mode<synchronous>, transform_indices = @transform_3, window_bounds = array<i64: 1, 128>}, {transform_indices = @transform_4, window_bounds = array<i64: 16, 128>}]} {
    %c0 = arith.constant 0 : index
    %c0_0 = arith.constant 0 : index
    %c0_1 = arith.constant 0 : index
    %0 = vector.load %arg2[%c0, %c0_0, %c0_1] : memref<16x8x128xbf16, #tpu.memory_space<vmem>>, vector<16x8x128xbf16>
    %1 = arith.extf %0 : vector<16x8x128xbf16> to vector<16x8x128xf32>
    %cst = arith.constant dense<0.000000e+00> : vector<16x128xf32>
    %2 = vector.multi_reduction <add>, %1, %cst [1] : vector<16x8x128xf32> to vector<16x128xf32>
    %c0_2 = arith.constant 0 : index
    %c0_3 = arith.constant 0 : index
    %3 = vector.load %arg1[%c0_2, %c0_3] : memref<16x128xbf16, #tpu.memory_space<vmem>>, vector<16x128xbf16>
    %4 = arith.truncf %2 : vector<16x128xf32> to vector<16x128xbf16>
    %5 = tpu.concatenate %3, %4 in 1 : vector<16x128xbf16>, vector<16x128xbf16> -> vector<16x256xbf16>
    %c0_4 = arith.constant 0 : index
    %c0_5 = arith.constant 0 : index
    %6 = vector.load %arg3[%c0_4, %c0_5] : memref<256x128xbf16, #tpu.memory_space<vmem>>, vector<256x128xbf16>
    %cst_6 = arith.constant dense<0.000000e+00> : vector<16x128xf32>
    %7 = tpu.matmul %5, %6, %cst_6 {dimension_numbers = #tpu.dot_dimension_numbers<[1], [0], [0], [1], [0, 0, 1, 1], [], []>} : vector<16x256xbf16>, vector<256x128xbf16>, vector<16x128xf32> -> vector<16x128xf32>
    %c0_7 = arith.constant 0 : index
    %c0_8 = arith.constant 0 : index
    %8 = vector.load %arg4[%c0_7, %c0_8] : memref<1x128xf32, #tpu.memory_space<vmem>>, vector<1x128xf32>
    %9 = vector.broadcast %8 : vector<1x128xf32> to vector<16x128xf32>
    %10 = arith.addf %7, %9 : vector<16x128xf32>
    %cst_9 = arith.constant 0.000000e+00 : f32
    %11 = vector.broadcast %cst_9 : f32 to vector<16x128xf32>
    %12 = arith.maximumf %10, %11 : vector<16x128xf32>
    %c0_10 = arith.constant 0 : index
    %c0_11 = arith.constant 0 : index
    %13 = vector.load %arg5[%c0_10, %c0_11] : memref<16x128xf32, #tpu.memory_space<vmem>>, vector<16x128xf32>
    tpu.vector_store %arg5[%c0_10, %c0_11], %12 {strides = array<i32>} : memref<16x128xf32, #tpu.memory_space<vmem>>, vector<16x128xf32>,
    return
  }
  func.func @transform_0(%arg0: i32) -> (i32, i32) {
    %c0_i32 = arith.constant 0 : i32
    %c0_i32_0 = arith.constant 0 : i32
    return %arg0, %c0_i32 : i32, i32
  }
  func.func @transform_1(%arg0: i32) -> (i32, i32, i32) {
    %c0_i32 = arith.constant 0 : i32
    %c0_i32_0 = arith.constant 0 : i32
    %c0_i32_1 = arith.constant 0 : i32
    return %arg0, %c0_i32, %c0_i32_0 : i32, i32, i32
  }
  func.func @transform_2(%arg0: i32) -> (i32, i32) {
    %c0_i32 = arith.constant 0 : i32
    %c0_i32_0 = arith.constant 0 : i32
    %c0_i32_1 = arith.constant 0 : i32
    return %c0_i32, %c0_i32_0 : i32, i32
  }
  func.func @transform_3(%arg0: i32) -> (i32, i32) {
    %c0_i32 = arith.constant 0 : i32
    %c0_i32_0 = arith.constant 0 : i32
    %c0_i32_1 = arith.constant 0 : i32
    return %c0_i32, %c0_i32_0 : i32, i32
  }
  func.func @transform_4(%arg0: i32) -> (i32, i32) {
    %c0_i32 = arith.constant 0 : i32
    %c0_i32_0 = arith.constant 0 : i32
    return %arg0, %c0_i32 : i32, i32
  }
}

</mosaic_0001>

<llo_original>
// kernel: vc_encoder_apply.1
$region0: #{vc_encoder_apply.1}
  #allocation0 [shape = 'u32[]', space=smem, size = 0x4, offset = 0x4, fixed_abs, tag = 'smem constant byte address 0x4 - core index']
  #allocation1 [shape = 'u32[144,128]{1,0:T(1,128)}', space=vmem, size = 0x12000, scoped, tag = 'internal scratch']
  %s0 = inlined_call_operand.vmem [shape: bf16[16,128], index: 0, kind: input, shape index: {}]
  %s1 = inlined_call_operand.vmem [shape: bf16[16,8,128], index: 1, kind: input, shape index: {}]
  %s2 = inlined_call_operand.vmem [shape: bf16[256,128], index: 2, kind: input, shape index: {}]
  %s3 = inlined_call_operand.vmem [shape: f32[1,128], index: 3, kind: input, shape index: {}]
  %s4 = inlined_call_operand.vmem [shape: f32[16,128], index: 4, kind: output, shape index: {}]
  %s5 = sld [smem:[#allocation0]]
  $region26: #{vc_encoder_apply.1} parent=0
    _
  %s7 = ssub.s32 1, %s5
  %s8 = scalar_select 0, %s7, %s5
  // Predicated region
  $region2: #{vc_encoder_apply.1} parent=0 // pred_check
    _
  $region3: #{vc_encoder_apply.1} parent=0 // pred_check_branch
    %10 = sbr.rel (0) target = $region5
  $region4: #{vc_encoder_apply.1} parent=0 // pred_region
    _
  $region5: #{vc_encoder_apply.1} parent=0 // pred_fallthru
    _
  // Predicated region
  $region6: #{vc_encoder_apply.1} parent=0 // pred_check
    _
  $region7: #{vc_encoder_apply.1} parent=0 // pred_check_branch
    %12 = sbr.rel (0) target = $region9
  $region8: #{vc_encoder_apply.1} parent=0 // pred_region
    _
  $region9: #{vc_encoder_apply.1} parent=0 // pred_fallthru
    _
  // Predicated region
  $region10: #{vc_encoder_apply.1} parent=0 // pred_check
    _
  $region11: #{vc_encoder_apply.1} parent=0 // pred_check_branch
    %14 = sbr.rel (0) target = $region13
  $region12: #{vc_encoder_apply.1} parent=0 // pred_region
    _
  $region13: #{vc_encoder_apply.1} parent=0 // pred_fallthru
    _
  // Predicated region
  $region14: #{vc_encoder_apply.1} parent=0 // pred_check
    _
  $region15: #{vc_encoder_apply.1} parent=0 // pred_check_branch
    %16 = sbr.rel (0) target = $region17
  $region16: #{vc_encoder_apply.1} parent=0 // pred_region
    _
  $region17: #{vc_encoder_apply.1} parent=0 // pred_fallthru
    _
  %v18 = vld [vmem:[%s1] sm:$0xf]
  %v19 = vld [vmem:[%s1 + $0x4] sm:$0xf]
  %v20 = vld [vmem:[%s1 + $0x8] sm:$0xf]
  %v21 = vld [vmem:[%s1 + $0xc] sm:$0xf]
  %v22 = vld [vmem:[%s1 + $0x10] sm:$0xf]
  %v23 = vld [vmem:[%s1 + $0x14] sm:$0xf]
  %v24 = vld [vmem:[%s1 + $0x18] sm:$0xf]
  %v25 = vld [vmem:[%s1 + $0x1c] sm:$0xf]
  %v26 = vld [vmem:[%s1 + $0x20] sm:$0xf]
  %v27 = vld [vmem:[%s1 + $0x24] sm:$0xf]
  %v28 = vld [vmem:[%s1 + $0x28] sm:$0xf]
  %v29 = vld [vmem:[%s1 + $0x2c] sm:$0xf]
  %v30 = vld [vmem:[%s1 + $0x30] sm:$0xf]
  %v31 = vld [vmem:[%s1 + $0x34] sm:$0xf]
  %v32 = vld [vmem:[%s1 + $0x38] sm:$0xf]
  %v33 = vld [vmem:[%s1 + $0x3c] sm:$0xf]
  %v34 = vunpack.c.l.bf16 %v18
  %v35 = vunpack.c.l.bf16 %v19
  %v36 = vunpack.c.l.bf16 %v20
  %v37 = vunpack.c.l.bf16 %v21
  %v38 = vunpack.c.l.bf16 %v22
  %v39 = vunpack.c.l.bf16 %v23
  %v40 = vunpack.c.l.bf16 %v24
  %v41 = vunpack.c.l.bf16 %v25
  %v42 = vunpack.c.l.bf16 %v26
  %v43 = vunpack.c.l.bf16 %v27
  %v44 = vunpack.c.l.bf16 %v28
  %v45 = vunpack.c.l.bf16 %v29
  %v46 = vunpack.c.l.bf16 %v30
  %v47 = vunpack.c.l.bf16 %v31
  %v48 = vunpack.c.l.bf16 %v32
  %v49 = vunpack.c.l.bf16 %v33
  %v50 = vrot.slane %v34, 4
  %v51 = vadd.f32 %v34, %v50
  %v52 = vrot.slane %v51, 2
  %v53 = vadd.f32 %v51, %v52
  %v54 = vrot.slane %v53, 1
  %v55 = vadd.f32 %v53, %v54
  %v56 = vrot.slane %v35, 4
  %v57 = vadd.f32 %v35, %v56
  %v58 = vrot.slane %v57, 2
  %v59 = vadd.f32 %v57, %v58
  %v60 = vrot.slane %v59, 1
  %v61 = vadd.f32 %v59, %v60
  %v62 = vrot.slane %v36, 4
  %v63 = vadd.f32 %v36, %v62
  %v64 = vrot.slane %v63, 2
  %v65 = vadd.f32 %v63, %v64
  %v66 = vrot.slane %v65, 1
  %v67 = vadd.f32 %v65, %v66
  %v68 = vrot.slane %v37, 4
  %v69 = vadd.f32 %v37, %v68
  %v70 = vrot.slane %v69, 2
  %v71 = vadd.f32 %v69, %v70
  %v72 = vrot.slane %v71, 1
  %v73 = vadd.f32 %v71, %v72
  %v74 = vrot.slane %v38, 4
  %v75 = vadd.f32 %v38, %v74
  %v76 = vrot.slane %v75, 2
  %v77 = vadd.f32 %v75, %v76
  %v78 = vrot.slane %v77, 1
  %v79 = vadd.f32 %v77, %v78
  %v80 = vrot.slane %v39, 4
  %v81 = vadd.f32 %v39, %v80
  %v82 = vrot.slane %v81, 2
  %v83 = vadd.f32 %v81, %v82
  %v84 = vrot.slane %v83, 1
  %v85 = vadd.f32 %v83, %v84
  %v86 = vrot.slane %v40, 4
  %v87 = vadd.f32 %v40, %v86
  %v88 = vrot.slane %v87, 2
  %v89 = vadd.f32 %v87, %v88
  %v90 = vrot.slane %v89, 1
  %v91 = vadd.f32 %v89, %v90
  %v92 = vrot.slane %v41, 4
  %v93 = vadd.f32 %v41, %v92
  %v94 = vrot.slane %v93, 2
  %v95 = vadd.f32 %v93, %v94
  %v96 = vrot.slane %v95, 1
  %v97 = vadd.f32 %v95, %v96
  %v98 = vrot.slane %v42, 4
  %v99 = vadd.f32 %v42, %v98
  %v100 = vrot.slane %v99, 2
  %v101 = vadd.f32 %v99, %v100
  %v102 = vrot.slane %v101, 1
  %v103 = vadd.f32 %v101, %v102
  %v104 = vrot.slane %v43, 4
  %v105 = vadd.f32 %v43, %v104
  %v106 = vrot.slane %v105, 2
  %v107 = vadd.f32 %v105, %v106
  %v108 = vrot.slane %v107, 1
  %v109 = vadd.f32 %v107, %v108
  %v110 = vrot.slane %v44, 4
  %v111 = vadd.f32 %v44, %v110
  %v112 = vrot.slane %v111, 2
  %v113 = vadd.f32 %v111, %v112
  %v114 = vrot.slane %v113, 1
  %v115 = vadd.f32 %v113, %v114
  %v116 = vrot.slane %v45, 4
  %v117 = vadd.f32 %v45, %v116
  %v118 = vrot.slane %v117, 2
  %v119 = vadd.f32 %v117, %v118
  %v120 = vrot.slane %v119, 1
  %v121 = vadd.f32 %v119, %v120
  %v122 = vrot.slane %v46, 4
  %v123 = vadd.f32 %v46, %v122
  %v124 = vrot.slane %v123, 2
  %v125 = vadd.f32 %v123, %v124
  %v126 = vrot.slane %v125, 1
  %v127 = vadd.f32 %v125, %v126
  %v128 = vrot.slane %v47, 4
  %v129 = vadd.f32 %v47, %v128
  %v130 = vrot.slane %v129, 2
  %v131 = vadd.f32 %v129, %v130
  %v132 = vrot.slane %v131, 1
  %v133 = vadd.f32 %v131, %v132
  %v134 = vrot.slane %v48, 4
  %v135 = vadd.f32 %v48, %v134
  %v136 = vrot.slane %v135, 2
  %v137 = vadd.f32 %v135, %v136
  %v138 = vrot.slane %v137, 1
  %v139 = vadd.f32 %v137, %v138
  %v140 = vrot.slane %v49, 4
  %v141 = vadd.f32 %v49, %v140
  %v142 = vrot.slane %v141, 2
  %v143 = vadd.f32 %v141, %v142
  %v144 = vrot.slane %v143, 1
  %v145 = vadd.f32 %v143, %v144
  %v146 = vld [vmem:[%s0] sm:$0xf]
  %v147 = vld [vmem:[%s0 + $0x4] sm:$0xf]
  %v148 = vpack.c.bf16 %v55, %v55
  %v149 = vpack.c.bf16 %v61, %v61
  %v150 = vpack.c.bf16 %v67, %v67
  %v151 = vpack.c.bf16 %v73, %v73
  %v152 = vpack.c.bf16 %v79, %v79
  %v153 = vpack.c.bf16 %v85, %v85
  %v154 = vpack.c.bf16 %v91, %v91
  %v155 = vpack.c.bf16 %v97, %v97
  %v156 = vpack.c.bf16 %v103, %v103
  %v157 = vpack.c.bf16 %v109, %v109
  %v158 = vpack.c.bf16 %v115, %v115
  %v159 = vpack.c.bf16 %v121, %v121
  %v160 = vpack.c.bf16 %v127, %v127
  %v161 = vpack.c.bf16 %v133, %v133
  %v162 = vpack.c.bf16 %v139, %v139
  %v163 = vpack.c.bf16 %v145, %v145
  %v166 = vunpack.c.l.b16 %v146
  %v167 = vunpack.c.l.b16 %v147
  %v168 = vpack.c.b16 %v167, %v166
  %v186 = vunpack.c.l.b16 %v148
  %v187 = vunpack.c.l.b16 %v149
  %v188 = vunpack.c.l.b16 %v150
  %v189 = vunpack.c.l.b16 %v151
  %v190 = vunpack.c.l.b16 %v152
  %v191 = vunpack.c.l.b16 %v153
  %v192 = vunpack.c.l.b16 %v154
  %v193 = vunpack.c.l.b16 %v155
  %v194 = vunpack.c.l.b16 %v156
  %v195 = vunpack.c.l.b16 %v157
  %v196 = vunpack.c.l.b16 %v158
  %v197 = vunpack.c.l.b16 %v159
  %v198 = vunpack.c.l.b16 %v160
  %v199 = vunpack.c.l.b16 %v161
  %v200 = vunpack.c.l.b16 %v162
  %v201 = vunpack.c.l.b16 %v163
  %vm202 = vcmask 1041409
  %v203 = vsel %vm202, %v187, %v186
  %vm204 = vcmask 1042434
  %v205 = vsel %vm204, %v188, %v203
  %vm206 = vcmask 1043459
  %v207 = vsel %vm206, %v189, %v205
  %vm208 = vcmask 1044484
  %v209 = vsel %vm208, %v190, %v207
  %vm210 = vcmask 1045509
  %v211 = vsel %vm210, %v191, %v209
  %vm212 = vcmask 1046534
  %v213 = vsel %vm212, %v192, %v211
  %vm214 = vcmask 1047559
  %v215 = vsel %vm214, %v193, %v213
  %v216 = vsel %vm202, %v195, %v194
  %v217 = vsel %vm204, %v196, %v216
  %v218 = vsel %vm206, %v197, %v217
  %v219 = vsel %vm208, %v198, %v218
  %v220 = vsel %vm210, %v199, %v219
  %v221 = vsel %vm212, %v200, %v220
  %v222 = vsel %vm214, %v201, %v221
  %v223 = vpack.c.b16 %v222, %v215
  %v225 = vld [vmem:[%s2] sm:$0xf]
  %v226 = vld [vmem:[%s2 + $0x4] sm:$0xf]
  %v227 = vld [vmem:[%s2 + $0x8] sm:$0xf]
  %v228 = vld [vmem:[%s2 + $0xc] sm:$0xf]
  %v229 = vld [vmem:[%s2 + $0x10] sm:$0xf]
  %v230 = vld [vmem:[%s2 + $0x14] sm:$0xf]
  %v231 = vld [vmem:[%s2 + $0x18] sm:$0xf]
  %v232 = vld [vmem:[%s2 + $0x1c] sm:$0xf]
  %v233 = vld [vmem:[%s2 + $0x20] sm:$0xf]
  %v234 = vld [vmem:[%s2 + $0x24] sm:$0xf]
  %v235 = vld [vmem:[%s2 + $0x28] sm:$0xf]
  %v236 = vld [vmem:[%s2 + $0x2c] sm:$0xf]
  %v237 = vld [vmem:[%s2 + $0x30] sm:$0xf]
  %v238 = vld [vmem:[%s2 + $0x34] sm:$0xf]
  %v239 = vld [vmem:[%s2 + $0x38] sm:$0xf]
  %v240 = vld [vmem:[%s2 + $0x3c] sm:$0xf]
  %v241 = vld [vmem:[%s2 + $0x40] sm:$0xf]
  %v242 = vld [vmem:[%s2 + $0x44] sm:$0xf]
  %v243 = vld [vmem:[%s2 + $0x48] sm:$0xf]
  %v244 = vld [vmem:[%s2 + $0x4c] sm:$0xf]
  %v245 = vld [vmem:[%s2 + $0x50] sm:$0xf]
  %v246 = vld [vmem:[%s2 + $0x54] sm:$0xf]
  %v247 = vld [vmem:[%s2 + $0x58] sm:$0xf]
  %v248 = vld [vmem:[%s2 + $0x5c] sm:$0xf]
  %v249 = vld [vmem:[%s2 + $0x60] sm:$0xf]
  %v250 = vld [vmem:[%s2 + $0x64] sm:$0xf]
  %v251 = vld [vmem:[%s2 + $0x68] sm:$0xf]
  %v252 = vld [vmem:[%s2 + $0x6c] sm:$0xf]
  %v253 = vld [vmem:[%s2 + $0x70] sm:$0xf]
  %v254 = vld [vmem:[%s2 + $0x74] sm:$0xf]
  %v255 = vld [vmem:[%s2 + $0x78] sm:$0xf]
  %v256 = vld [vmem:[%s2 + $0x7c] sm:$0xf]
  %v257 = vld [vmem:[%s3] sm:$0x1]
  %v259 = vlaneseq
  %v260 = vshrl.u32 %v259, 7
  %v261 = vsub.s32 0, %v260
  %v262 = vrot.slane %v257, %v261
  %v296 = vunpack.c.l.b16 %v225
  %v297 = vunpack.c.l.b16 %v226
  %v298 = vunpack.c.l.b16 %v227
  %v299 = vunpack.c.l.b16 %v228
  %v300 = vunpack.c.l.b16 %v229
  %v301 = vunpack.c.l.b16 %v230
  %v302 = vunpack.c.l.b16 %v231
  %v303 = vunpack.c.l.b16 %v232
  %v304 = vunpack.c.l.b16 %v233
  %v305 = vunpack.c.l.b16 %v234
  %v306 = vunpack.c.l.b16 %v235
  %v307 = vunpack.c.l.b16 %v236
  %v308 = vunpack.c.l.b16 %v237
  %v309 = vunpack.c.l.b16 %v238
  %v310 = vunpack.c.l.b16 %v239
  %v311 = vunpack.c.l.b16 %v240
  %v312 = vunpack.c.l.b16 %v241
  %v313 = vunpack.c.l.b16 %v242
  %v314 = vunpack.c.l.b16 %v243
  %v315 = vunpack.c.l.b16 %v244
  %v316 = vunpack.c.l.b16 %v245
  %v317 = vunpack.c.l.b16 %v246
  %v318 = vunpack.c.l.b16 %v247
  %v319 = vunpack.c.l.b16 %v248
  %v320 = vunpack.c.l.b16 %v249
  %v321 = vunpack.c.l.b16 %v250
  %v322 = vunpack.c.l.b16 %v251
  %v323 = vunpack.c.l.b16 %v252
  %v324 = vunpack.c.l.b16 %v253
  %v325 = vunpack.c.l.b16 %v254
  %v326 = vunpack.c.l.b16 %v255
  %v327 = vunpack.c.l.b16 %v256
  %v328 = vpack.c.b16 %v297, %v296
  %v329 = vpack.c.b16 %v299, %v298
  %v330 = vpack.c.b16 %v301, %v300
  %v331 = vpack.c.b16 %v303, %v302
  %v332 = vpack.c.b16 %v305, %v304
  %v333 = vpack.c.b16 %v307, %v306
  %v334 = vpack.c.b16 %v309, %v308
  %v335 = vpack.c.b16 %v311, %v310
  %v336 = vpack.c.b16 %v313, %v312
  %v337 = vpack.c.b16 %v315, %v314
  %v338 = vpack.c.b16 %v317, %v316
  %v339 = vpack.c.b16 %v319, %v318
  %v340 = vpack.c.b16 %v321, %v320
  %v341 = vpack.c.b16 %v323, %v322
  %v342 = vpack.c.b16 %v325, %v324
  %v343 = vpack.c.b16 %v327, %v326
  %360 = vmatprep.subr.bf16.mxu0 0
  %361 = vmatpush1.bf16.msra.mxu0 %v328
  %362 = vmatprep.subr.bf16.mxu0 0
  %363 = vmatpush1.bf16.msra.mxu0 %v329
  %364 = vmatprep.subr.bf16.mxu0 0
  %365 = vmatpush1.bf16.msra.mxu0 %v330
  %366 = vmatprep.subr.bf16.mxu0 0
  %367 = vmatpush1.bf16.msra.mxu0 %v331
  %368 = vmatprep.subr.bf16.mxu0 0
  %369 = vmatpush1.bf16.msra.mxu0 %v332
  %370 = vmatprep.subr.bf16.mxu0 0
  %371 = vmatpush1.bf16.msra.mxu0 %v333
  %372 = vmatprep.subr.bf16.mxu0 0
  %373 = vmatpush1.bf16.msra.mxu0 %v334
  %374 = vmatprep.subr.bf16.mxu0 0
  %375 = vmatpush1.bf16.msra.mxu0 %v335
  %376 = vmatprep.subr.bf16.mxu0 0
  %377 = vmatpush1.bf16.msra.mxu0 %v336
  %378 = vmatprep.subr.bf16.mxu0 0
  %379 = vmatpush1.bf16.msra.mxu0 %v337
  %380 = vmatprep.subr.bf16.mxu0 0
  %381 = vmatpush1.bf16.msra.mxu0 %v338
  %382 = vmatprep.subr.bf16.mxu0 0
  %383 = vmatpush1.bf16.msra.mxu0 %v339
  %384 = vmatprep.subr.bf16.mxu0 0
  %385 = vmatpush1.bf16.msra.mxu0 %v340
  %386 = vmatprep.subr.bf16.mxu0 0
  %387 = vmatpush1.bf16.msra.mxu0 %v341
  %388 = vmatprep.subr.bf16.mxu0 0
  %389 = vmatpush1.bf16.msra.mxu0 %v342
  %390 = vmatprep.subr.bf16.mxu0 0
  %391 = vmatpush1.bf16.msra.mxu0 %v343
  %392 = vmatprep.mubr.bf16.mxu0 %v223
  %393 = vmatmul.mubr.bf16.gmra.mrb[0].mxu0 %v168
  %v394 = vpop.f32.mrb[0].mxu0
  %v395 = vadd.f32 %v262, %v394
  %v396 = vpop.f32.mrb[0].mxu0
  %v397 = vpop.f32.mrb[0].mxu0
  %v398 = vadd.f32 %v262, %v397
  %v399 = vpop.f32.mrb[0].mxu0
  %400 = vdwg.mxu0
  %v401 = vmax.f32 %v395, 0.0
  %v402 = vmax.f32 %v398, 0.0
  %403 = vst [vmem:[%s4] sm:$0xff] %v401
  %404 = vst [vmem:[%s4 + $0x8] sm:$0xff] %v402
  // Predicated region
  $region18: #{vc_encoder_apply.1} parent=0 // pred_check
    _
  $region19: #{vc_encoder_apply.1} parent=0 // pred_check_branch
    %406 = sbr.rel (0) target = $region21
  $region20: #{vc_encoder_apply.1} parent=0 // pred_region
    _
  $region21: #{vc_encoder_apply.1} parent=0 // pred_fallthru
    _
  // Predicated region
  $region22: #{vc_encoder_apply.1} parent=0 // pred_check
    _
  $region23: #{vc_encoder_apply.1} parent=0 // pred_check_branch
    %408 = sbr.rel (0) target = $region25
  $region24: #{vc_encoder_apply.1} parent=0 // pred_region
    _
  $region25: #{vc_encoder_apply.1} parent=0 // pred_fallthru
    _

</llo_original>
